<compile_context>
chip_gen: v5e
topology: v5e:2x2
jax: 0.10.0
libtpu: 0.0.40
codegen_flags: <defaults>
</compile_context>

<pallas_src>
import functools

import jax
import jax.numpy as jnp
from jax import lax
from jax.experimental import pallas as pl
from jax.experimental.pallas import tpu as pltpu

SUBLANES = 8
LANES = 128

# Set to jnp.bfloat16 on v6e/v7x for ~3x fewer MXU passes on the off-path
# (gather / projection / fc) matmuls; loosen the tolerance check to ~1e-2 if
# you do.  Kept f32 by default so the strict reference check passes and so
# v5e (no bf16 VPU/EUP) sees no extra convert traffic.
MXU_DTYPE = jnp.float32


def _emotion_rnn_kernel(tok_ref, emb_ref, wih_ref, whh_ref, brnn_ref,
                        wfc_ref, bfc_ref, out_ref, *, num_classes):
    """Single invocation; every operand is fully resident in VMEM.

    tok_ref : (T*Bp, 1) int32  time-major token ids (row t*Bp + b = tokens[b, t],
                               batch zero-padded to Bp = 8 sublanes)
    emb_ref : (Vp, E)  f32     embedding table, vocab zero-padded to lane multiple
    wih_ref : (E, H)   f32     W_ih^T
    whh_ref : (H, H)   f32     W_hh^T
    brnn_ref: (1, H)   f32     b_ih + b_hh (pre-combined in the wrapper)
    wfc_ref : (H, Op)  f32     W_fc^T, classes zero-padded to 128 lanes
    bfc_ref : (1, Op)  f32
    out_ref : (Bp, Op) f32     lane-dense log-probs (first B rows / num_classes lanes valid)
    """
    TBp = tok_ref.shape[0]
    Vp = emb_ref.shape[0]
    Bp, Op = out_ref.shape
    T = TBp // Bp
    H = whh_ref.shape[0]
    del H  # (kept for readability of shapes above)

    # Fused embedding gather via one-hot matmul, re-associated so the big MXU
    # pass is (TBp, Vp) @ (Vp, E) with TBp << Vp, then a tiny (TBp, E) @ (E, H):
    #   x_emb[t*Bp + b]  = emb[tokens[b, t]]                (exact: onehot is 0/1)
    #   x_proj[t*Bp + b] = x_emb[t*Bp + b] @ W_ih^T + (b_ih + b_hh)
    # Both passes cover the whole sequence and sit OFF the serial recurrence path.
    vocab_ids = lax.broadcasted_iota(jnp.int32, (TBp, Vp), 1)
    onehot = (vocab_ids == tok_ref[...]).astype(MXU_DTYPE)               # (TBp, Vp)
    x_emb = jnp.dot(onehot, emb_ref[...].astype(MXU_DTYPE),
                    preferred_element_type=jnp.float32)                  # (TBp, E)
    x_proj = (jnp.dot(x_emb.astype(MXU_DTYPE), wih_ref[...].astype(MXU_DTYPE),
                      preferred_element_type=jnp.float32)
              + brnn_ref[...])                                           # (TBp, H)

    whh = whh_ref[...]  # loop-invariant weight: load once, keep in vregs

    # Serial tanh recurrence, fully unrolled (T small & static): one MXU op per
    # step.  Slice starts t*Bp are multiples of 8 -> whole-sublane-tile slices,
    # no cross-sublane relayout on the critical path.  Recurrence matmul stays
    # f32: it is tiny / latency-bound and this keeps accuracy vs the reference.
    h = jnp.zeros((Bp, whh.shape[0]), jnp.float32)
    for t in range(T):
        pre = x_proj[t * Bp:(t + 1) * Bp, :] + jnp.dot(
            h, whh, preferred_element_type=jnp.float32)
        h = jnp.tanh(pre)

    # fc on the last hidden state + log_softmax over the real classes.
    # Padded lanes (>= num_classes) are forced very negative so exp() -> 0.
    # (logits are always f32 here, so a finite -1e30 mask is safe; make this
    #  dtype-aware if the tail is ever moved to bf16.)
    logits = (jnp.dot(h.astype(MXU_DTYPE), wfc_ref[...].astype(MXU_DTYPE),
                      preferred_element_type=jnp.float32)
              + bfc_ref[...])                                            # (Bp, Op)
    lane = lax.broadcasted_iota(jnp.int32, (Bp, Op), 1)
    logits = jnp.where(lane < num_classes, logits, jnp.float32(-1e30))
    m = jnp.max(logits, axis=-1, keepdims=True)
    shifted = logits - m
    lse = jnp.log(jnp.sum(jnp.exp(shifted), axis=-1, keepdims=True))
    out_ref[...] = shifted - lse


def emotion_rnn_forward(tokens, params):
    """tokens: (B, T) int32.  Returns (B, O) float32 log-probabilities."""
    emb_table, w_ih, w_hh, b_ih, b_hh, w_fc, b_fc = params
    B, T = tokens.shape
    V, E = emb_table.shape
    H = w_hh.shape[0]
    O = w_fc.shape[1]

    Bp = pl.cdiv(B, SUBLANES) * SUBLANES   # batch padded to one sublane tile
    Vp = pl.cdiv(V, LANES) * LANES         # one-hot lane width (vocab padded)
    Op = pl.cdiv(O, LANES) * LANES         # lane-dense output / fc width

    emb_pad = jnp.zeros((Vp, E), jnp.float32).at[:V, :].set(emb_table)
    wfc_pad = jnp.zeros((H, Op), jnp.float32).at[:, :O].set(w_fc)
    bfc_pad = jnp.zeros((1, Op), jnp.float32).at[0, :O].set(b_fc)
    b_rnn = (b_ih + b_hh).reshape(1, H)

    # Time-major, sublane-padded token ids: row t*Bp + b corresponds to
    # tokens[b, t]; pad rows use id 0 (their hidden rows are discarded).
    tok_pad = jnp.zeros((Bp, T), jnp.int32).at[:B, :].set(tokens.astype(jnp.int32))
    tok_tm = tok_pad.T.reshape(T * Bp, 1)

    vmem_spec = lambda: pl.BlockSpec(memory_space=pltpu.MemorySpace.VMEM)
    kernel = functools.partial(_emotion_rnn_kernel, num_classes=O)
    out_pad = pl.pallas_call(
        kernel,
        out_shape=jax.ShapeDtypeStruct((Bp, Op), jnp.float32),
        # No grid: single invocation, all operands explicitly VMEM-resident
        # (total < 100 KB, far under every generation's VMEM limit).
        in_specs=[vmem_spec() for _ in range(7)],
        out_specs=vmem_spec(),
    )(tok_tm, emb_pad, w_ih, w_hh, b_rnn, wfc_pad, bfc_pad)
    return out_pad[:B, :O]


def init_params(key, vocab_size, embedding_dim, hidden_units, output_size):
    ks = jax.random.split(key, 7)
    scale = 0.1
    emb_table = scale * jax.random.normal(ks[0], (vocab_size, embedding_dim), jnp.float32)
    # Stored already transposed for right-multiplication: x @ W_ih^T etc.
    w_ih = scale * jax.random.normal(ks[1], (embedding_dim, hidden_units), jnp.float32)
    w_hh = scale * jax.random.normal(ks[2], (hidden_units, hidden_units), jnp.float32)
    b_ih = scale * jax.random.normal(ks[3], (hidden_units,), jnp.float32)
    b_hh = scale * jax.random.normal(ks[4], (hidden_units,), jnp.float32)
    w_fc = scale * jax.random.normal(ks[5], (hidden_units, output_size), jnp.float32)
    b_fc = scale * jax.random.normal(ks[6], (output_size,), jnp.float32)
    return (emb_table, w_ih, w_hh, b_ih, b_hh, w_fc, b_fc)


def reference_forward(tokens, params):
    """Pure-JAX reference matching PyTorch EmotionRNN.forward semantics."""
    emb_table, w_ih, w_hh, b_ih, b_hh, w_fc, b_fc = params
    x = jnp.take(emb_table, tokens, axis=0)            # (B, T, E)
    B = x.shape[0]
    H = w_hh.shape[0]

    def step(h, x_t):
        h_new = jnp.tanh(x_t @ w_ih + b_ih + h @ w_hh + b_hh)
        return h_new, h_new

    h0 = jnp.zeros((B, H), jnp.float32)
    h_last, _ = lax.scan(step, h0, jnp.transpose(x, (1, 0, 2)))
    logits = h_last @ w_fc + b_fc
    return jax.nn.log_softmax(logits, axis=1)


if __name__ == "__main__":
    # Small, module-consistent shapes.
    vocab_size, embedding_dim, hidden_units, output_size = 100, 32, 32, 6
    batch, seq = 2, 8

    key = jax.random.PRNGKey(0)
    k_tok, k_par = jax.random.split(key)
    tokens = jax.random.randint(k_tok, (batch, seq), 0, vocab_size, dtype=jnp.int32)
    params = init_params(k_par, vocab_size, embedding_dim, hidden_units, output_size)

    out = emotion_rnn_forward(tokens, params)
    out = jax.block_until_ready(out)

    ref = jax.block_until_ready(reference_forward(tokens, params))
    assert out.shape == (batch, output_size)
    assert jnp.allclose(out, ref, atol=1e-4, rtol=1e-4), "mismatch vs reference"

    print("KERNEL_OK")
</pallas_src>

<mosaic_0001>
module attributes {stable_mosaic.version = 11 : i64} {
  func.func @_emotion_rnn_kernel(%arg0: memref<64x1xi32, #tpu.memory_space<vmem>>, %arg1: memref<128x32xf32, #tpu.memory_space<vmem>>, %arg2: memref<32x32xf32, #tpu.memory_space<vmem>>, %arg3: memref<32x32xf32, #tpu.memory_space<vmem>>, %arg4: memref<1x32xf32, #tpu.memory_space<vmem>>, %arg5: memref<32x128xf32, #tpu.memory_space<vmem>>, %arg6: memref<1x128xf32, #tpu.memory_space<vmem>>, %arg7: memref<8x128xf32, #tpu.memory_space<vmem>>) attributes {dimension_semantics = [], scalar_prefetch = 0 : i64, scratch_operands = 0 : i64, tpu.core_type = #tpu.core_type<tc>} {
    %0 = tpu.iota {dimensions = array<i32: 1>} : vector<64x128xi32>
    %c0 = arith.constant 0 : index
    %c0_0 = arith.constant 0 : index
    %1 = vector.load %arg0[%c0, %c0_0] : memref<64x1xi32, #tpu.memory_space<vmem>>, vector<64x1xi32>
    %2 = vector.broadcast %1 : vector<64x1xi32> to vector<64x128xi32>
    %3 = arith.cmpi eq, %0, %2 : vector<64x128xi32>
    %4 = arith.extui %3 : vector<64x128xi1> to vector<64x128xi32>
    %5 = arith.sitofp %4 : vector<64x128xi32> to vector<64x128xf32>
    %c0_1 = arith.constant 0 : index
    %c0_2 = arith.constant 0 : index
    %6 = vector.load %arg1[%c0_1, %c0_2] : memref<128x32xf32, #tpu.memory_space<vmem>>, vector<128x32xf32>
    %cst = arith.constant dense<0.000000e+00> : vector<64x32xf32>
    %7 = tpu.matmul %5, %6, %cst {dimension_numbers = #tpu.dot_dimension_numbers<[1], [0], [0], [1], [0, 0, 1, 1], [], []>} : vector<64x128xf32>, vector<128x32xf32>, vector<64x32xf32> -> vector<64x32xf32>
    %c0_3 = arith.constant 0 : index
    %c0_4 = arith.constant 0 : index
    %8 = vector.load %arg2[%c0_3, %c0_4] : memref<32x32xf32, #tpu.memory_space<vmem>>, vector<32x32xf32>
    %cst_5 = arith.constant dense<0.000000e+00> : vector<64x32xf32>
    %9 = tpu.matmul %7, %8, %cst_5 {dimension_numbers = #tpu.dot_dimension_numbers<[1], [0], [0], [1], [0, 0, 1, 1], [], []>} : vector<64x32xf32>, vector<32x32xf32>, vector<64x32xf32> -> vector<64x32xf32>
    %c0_6 = arith.constant 0 : index
    %c0_7 = arith.constant 0 : index
    %10 = vector.load %arg4[%c0_6, %c0_7] : memref<1x32xf32, #tpu.memory_space<vmem>>, vector<1x32xf32>
    %11 = vector.broadcast %10 : vector<1x32xf32> to vector<64x32xf32>
    %12 = arith.addf %9, %11 : vector<64x32xf32>
    %c0_8 = arith.constant 0 : index
    %c0_9 = arith.constant 0 : index
    %13 = vector.load %arg3[%c0_8, %c0_9] : memref<32x32xf32, #tpu.memory_space<vmem>>, vector<32x32xf32>
    %cst_10 = arith.constant 0.000000e+00 : f32
    %14 = vector.broadcast %cst_10 : f32 to vector<8x32xf32>
    %15 = vector.extract_strided_slice %12 {offsets = [0, 0], sizes = [8, 32], strides = [1, 1]} : vector<64x32xf32> to vector<8x32xf32>
    %cst_11 = arith.constant dense<0.000000e+00> : vector<8x32xf32>
    %16 = tpu.matmul %14, %13, %cst_11 {dimension_numbers = #tpu.dot_dimension_numbers<[1], [0], [0], [1], [0, 0, 1, 1], [], []>} : vector<8x32xf32>, vector<32x32xf32>, vector<8x32xf32> -> vector<8x32xf32>
    %17 = arith.addf %15, %16 : vector<8x32xf32>
    %18 = math.tanh %17 : vector<8x32xf32>
    %19 = vector.extract_strided_slice %12 {offsets = [8, 0], sizes = [8, 32], strides = [1, 1]} : vector<64x32xf32> to vector<8x32xf32>
    %cst_12 = arith.constant dense<0.000000e+00> : vector<8x32xf32>
    %20 = tpu.matmul %18, %13, %cst_12 {dimension_numbers = #tpu.dot_dimension_numbers<[1], [0], [0], [1], [0, 0, 1, 1], [], []>} : vector<8x32xf32>, vector<32x32xf32>, vector<8x32xf32> -> vector<8x32xf32>
    %21 = arith.addf %19, %20 : vector<8x32xf32>
    %22 = math.tanh %21 : vector<8x32xf32>
    %23 = vector.extract_strided_slice %12 {offsets = [16, 0], sizes = [8, 32], strides = [1, 1]} : vector<64x32xf32> to vector<8x32xf32>
    %cst_13 = arith.constant dense<0.000000e+00> : vector<8x32xf32>
    %24 = tpu.matmul %22, %13, %cst_13 {dimension_numbers = #tpu.dot_dimension_numbers<[1], [0], [0], [1], [0, 0, 1, 1], [], []>} : vector<8x32xf32>, vector<32x32xf32>, vector<8x32xf32> -> vector<8x32xf32>
    %25 = arith.addf %23, %24 : vector<8x32xf32>
    %26 = math.tanh %25 : vector<8x32xf32>
    %27 = vector.extract_strided_slice %12 {offsets = [24, 0], sizes = [8, 32], strides = [1, 1]} : vector<64x32xf32> to vector<8x32xf32>
    %cst_14 = arith.constant dense<0.000000e+00> : vector<8x32xf32>
    %28 = tpu.matmul %26, %13, %cst_14 {dimension_numbers = #tpu.dot_dimension_numbers<[1], [0], [0], [1], [0, 0, 1, 1], [], []>} : vector<8x32xf32>, vector<32x32xf32>, vector<8x32xf32> -> vector<8x32xf32>
    %29 = arith.addf %27, %28 : vector<8x32xf32>
    %30 = math.tanh %29 : vector<8x32xf32>
    %31 = vector.extract_strided_slice %12 {offsets = [32, 0], sizes = [8, 32], strides = [1, 1]} : vector<64x32xf32> to vector<8x32xf32>
    %cst_15 = arith.constant dense<0.000000e+00> : vector<8x32xf32>
    %32 = tpu.matmul %30, %13, %cst_15 {dimension_numbers = #tpu.dot_dimension_numbers<[1], [0], [0], [1], [0, 0, 1, 1], [], []>} : vector<8x32xf32>, vector<32x32xf32>, vector<8x32xf32> -> vector<8x32xf32>
    %33 = arith.addf %31, %32 : vector<8x32xf32>
    %34 = math.tanh %33 : vector<8x32xf32>
    %35 = vector.extract_strided_slice %12 {offsets = [40, 0], sizes = [8, 32], strides = [1, 1]} : vector<64x32xf32> to vector<8x32xf32>
    %cst_16 = arith.constant dense<0.000000e+00> : vector<8x32xf32>
    %36 = tpu.matmul %34, %13, %cst_16 {dimension_numbers = #tpu.dot_dimension_numbers<[1], [0], [0], [1], [0, 0, 1, 1], [], []>} : vector<8x32xf32>, vector<32x32xf32>, vector<8x32xf32> -> vector<8x32xf32>
    %37 = arith.addf %35, %36 : vector<8x32xf32>
    %38 = math.tanh %37 : vector<8x32xf32>
    %39 = vector.extract_strided_slice %12 {offsets = [48, 0], sizes = [8, 32], strides = [1, 1]} : vector<64x32xf32> to vector<8x32xf32>
    %cst_17 = arith.constant dense<0.000000e+00> : vector<8x32xf32>
    %40 = tpu.matmul %38, %13, %cst_17 {dimension_numbers = #tpu.dot_dimension_numbers<[1], [0], [0], [1], [0, 0, 1, 1], [], []>} : vector<8x32xf32>, vector<32x32xf32>, vector<8x32xf32> -> vector<8x32xf32>
    %41 = arith.addf %39, %40 : vector<8x32xf32>
    %42 = math.tanh %41 : vector<8x32xf32>
    %43 = vector.extract_strided_slice %12 {offsets = [56, 0], sizes = [8, 32], strides = [1, 1]} : vector<64x32xf32> to vector<8x32xf32>
    %cst_18 = arith.constant dense<0.000000e+00> : vector<8x32xf32>
    %44 = tpu.matmul %42, %13, %cst_18 {dimension_numbers = #tpu.dot_dimension_numbers<[1], [0], [0], [1], [0, 0, 1, 1], [], []>} : vector<8x32xf32>, vector<32x32xf32>, vector<8x32xf32> -> vector<8x32xf32>
    %45 = arith.addf %43, %44 : vector<8x32xf32>
    %46 = math.tanh %45 : vector<8x32xf32>
    %c0_19 = arith.constant 0 : index
    %c0_20 = arith.constant 0 : index
    %47 = vector.load %arg5[%c0_19, %c0_20] : memref<32x128xf32, #tpu.memory_space<vmem>>, vector<32x128xf32>
    %cst_21 = arith.constant dense<0.000000e+00> : vector<8x128xf32>
    %48 = tpu.matmul %46, %47, %cst_21 {dimension_numbers = #tpu.dot_dimension_numbers<[1], [0], [0], [1], [0, 0, 1, 1], [], []>} : vector<8x32xf32>, vector<32x128xf32>, vector<8x128xf32> -> vector<8x128xf32>
    %c0_22 = arith.constant 0 : index
    %c0_23 = arith.constant 0 : index
    %49 = vector.load %arg6[%c0_22, %c0_23] : memref<1x128xf32, #tpu.memory_space<vmem>>, vector<1x128xf32>
    %50 = vector.broadcast %49 : vector<1x128xf32> to vector<8x128xf32>
    %51 = arith.addf %48, %50 : vector<8x128xf32>
    %52 = tpu.iota {dimensions = array<i32: 1>} : vector<8x128xi32>
    %c6_i32 = arith.constant 6 : i32
    %53 = vector.broadcast %c6_i32 : i32 to vector<8x128xi32>
    %54 = arith.cmpi slt, %52, %53 : vector<8x128xi32>
    %cst_24 = arith.constant -1.000000e+30 : f32
    %55 = vector.broadcast %cst_24 : f32 to vector<8x128xf32>
    %56 = arith.select %54, %51, %55 : vector<8x128xi1>, vector<8x128xf32>
    %cst_25 = arith.constant dense<0xFF800000> : vector<8xf32>
    %57 = vector.multi_reduction <maximumf>, %56, %cst_25 [1] : vector<8x128xf32> to vector<8xf32>
    %58 = vector.shape_cast %57 : vector<8xf32> to vector<8x1xf32>
    %59 = vector.broadcast %58 : vector<8x1xf32> to vector<8x128xf32>
    %60 = arith.subf %56, %59 : vector<8x128xf32>
    %61 = math.exp %60 : vector<8x128xf32>
    %cst_26 = arith.constant dense<0.000000e+00> : vector<8xf32>
    %62 = vector.multi_reduction <add>, %61, %cst_26 [1] : vector<8x128xf32> to vector<8xf32>
    %63 = vector.shape_cast %62 : vector<8xf32> to vector<8x1xf32>
    %64 = math.log %63 : vector<8x1xf32>
    %65 = vector.broadcast %64 : vector<8x1xf32> to vector<8x128xf32>
    %66 = arith.subf %60, %65 : vector<8x128xf32>
    %c0_27 = arith.constant 0 : index
    %c0_28 = arith.constant 0 : index
    %67 = vector.load %arg7[%c0_27, %c0_28] : memref<8x128xf32, #tpu.memory_space<vmem>>, vector<8x128xf32>
    tpu.vector_store %arg7[%c0_27, %c0_28], %66 {strides = array<i32>} : memref<8x128xf32, #tpu.memory_space<vmem>>, vector<8x128xf32>,
    return
  }
}

</mosaic_0001>

<llo_original>
// kernel: tpu_custom_call.1
$region0: #{tpu_custom_call.1}
  #allocation0 [shape = 'u32[]', space=smem, size = 0x4, offset = 0x4, fixed_abs, tag = 'smem constant byte address 0x4 - core index']
  #allocation1 [shape = 'u32[72,128]{1,0:T(1,128)}', space=vmem, size = 0x9000, scoped, tag = 'internal scratch']
  %s0 = inlined_call_operand.vmem [shape: s32[64,1], index: 0, kind: input, shape index: {}]
  %s1 = inlined_call_operand.vmem [shape: f32[128,32], index: 1, kind: input, shape index: {}]
  %s2 = inlined_call_operand.vmem [shape: f32[32,32], index: 2, kind: input, shape index: {}]
  %s3 = inlined_call_operand.vmem [shape: f32[32,32], index: 3, kind: input, shape index: {}]
  %s4 = inlined_call_operand.vmem [shape: f32[1,32], index: 4, kind: input, shape index: {}]
  %s5 = inlined_call_operand.vmem [shape: f32[32,128], index: 5, kind: input, shape index: {}]
  %s6 = inlined_call_operand.vmem [shape: f32[1,128], index: 6, kind: input, shape index: {}]
  %s7 = inlined_call_operand.hbm [shape: f32[8,128], index: 7, kind: output, shape index: {}]
  %s8 = sld [smem:[#allocation0]]
  $region38: #{tpu_custom_call.1} parent=0
    _
  %s10 = ssub.s32 1, %s8
  %s11 = scalar_select 0, %s10, %s8
  $region1: #{tpu_custom_call.1} parent=0
    #allocation2 [shape = 'u8[4096]{0}', space=vmem, size = 0x1000, scoped, tag = 'output window, operand 0, single buffered']
    #allocation3 [shape = 's32[1]{0}', space=sflag, size = 0x4, scoped, tag = 'scoped memory for tpu_custom_call.1']
    %12 = vsyncpa [#allocation3], 0
    // Predicated region
    $region2: #{tpu_custom_call.1} parent=1 // pred_check
      _
    $region3: #{tpu_custom_call.1} parent=1 // pred_check_branch
      %14 = sbr.rel (0) target = $region5
    $region4: #{tpu_custom_call.1} parent=1 // pred_region
      _
    $region5: #{tpu_custom_call.1} parent=1 // pred_fallthru
      _
    // Predicated region
    $region6: #{tpu_custom_call.1} parent=1 // pred_check
      _
    $region7: #{tpu_custom_call.1} parent=1 // pred_check_branch
      %16 = sbr.rel (0) target = $region9
    $region8: #{tpu_custom_call.1} parent=1 // pred_region
      _
    $region9: #{tpu_custom_call.1} parent=1 // pred_fallthru
      _
    // Predicated region
    $region10: #{tpu_custom_call.1} parent=1 // pred_check
      _
    $region11: #{tpu_custom_call.1} parent=1 // pred_check_branch
      %18 = sbr.rel (0) target = $region13
    $region12: #{tpu_custom_call.1} parent=1 // pred_region
      _
    $region13: #{tpu_custom_call.1} parent=1 // pred_fallthru
      _
    // Predicated region
    $region14: #{tpu_custom_call.1} parent=1 // pred_check
      _
    $region15: #{tpu_custom_call.1} parent=1 // pred_check_branch
      %20 = sbr.rel (0) target = $region17
    $region16: #{tpu_custom_call.1} parent=1 // pred_region
      _
    $region17: #{tpu_custom_call.1} parent=1 // pred_fallthru
      _
    // Predicated region
    $region18: #{tpu_custom_call.1} parent=1 // pred_check
      _
    $region19: #{tpu_custom_call.1} parent=1 // pred_check_branch
      %22 = sbr.rel (0) target = $region21
    $region20: #{tpu_custom_call.1} parent=1 // pred_region
      _
    $region21: #{tpu_custom_call.1} parent=1 // pred_fallthru
      _
    // Predicated region
    $region22: #{tpu_custom_call.1} parent=1 // pred_check
      _
    $region23: #{tpu_custom_call.1} parent=1 // pred_check_branch
      %24 = sbr.rel (0) target = $region25
    $region24: #{tpu_custom_call.1} parent=1 // pred_region
      _
    $region25: #{tpu_custom_call.1} parent=1 // pred_fallthru
      _
    // Predicated region
    $region26: #{tpu_custom_call.1} parent=1 // pred_check
      _
    $region27: #{tpu_custom_call.1} parent=1 // pred_check_branch
      %26 = sbr.rel (0) target = $region29
    $region28: #{tpu_custom_call.1} parent=1 // pred_region
      _
    $region29: #{tpu_custom_call.1} parent=1 // pred_fallthru
      _
    %v27 = vlaneseq
    %v28 = vand.u32 %v27, 127
    %v29 = vld [vmem:[%s0] sm:$0xff]
    %v30 = vld [vmem:[%s0 + $0x8] sm:$0xff]
    %v31 = vld [vmem:[%s0 + $0x10] sm:$0xff]
    %v32 = vld [vmem:[%s0 + $0x18] sm:$0xff]
    %v33 = vld [vmem:[%s0 + $0x20] sm:$0xff]
    %v34 = vld [vmem:[%s0 + $0x28] sm:$0xff]
    %v35 = vld [vmem:[%s0 + $0x30] sm:$0xff]
    %v36 = vld [vmem:[%s0 + $0x38] sm:$0xff]
    %37 = vset.pattern.permute.xlu0 0
    %38 = vperm.xlu0 %37, %v29
    %v39 = vpop.permute.xlu0 %38
    %40 = vset.pattern.permute.xlu0 0
    %41 = vperm.xlu0 %40, %v30
    %v42 = vpop.permute.xlu0 %41
    %43 = vset.pattern.permute.xlu0 0
    %44 = vperm.xlu0 %43, %v31
    %v45 = vpop.permute.xlu0 %44
    %46 = vset.pattern.permute.xlu0 0
    %47 = vperm.xlu0 %46, %v32
    %v48 = vpop.permute.xlu0 %47
    %49 = vset.pattern.permute.xlu0 0
    %50 = vperm.xlu0 %49, %v33
    %v51 = vpop.permute.xlu0 %50
    %52 = vset.pattern.permute.xlu0 0
    %53 = vperm.xlu0 %52, %v34
    %v54 = vpop.permute.xlu0 %53
    %55 = vset.pattern.permute.xlu0 0
    %56 = vperm.xlu0 %55, %v35
    %v57 = vpop.permute.xlu0 %56
    %58 = vset.pattern.permute.xlu0 0
    %59 = vperm.xlu0 %58, %v36
    %v60 = vpop.permute.xlu0 %59
    %vm61 = vcmp.eq.s32.totalorder %v28, %v39
    %vm62 = vcmp.eq.s32.totalorder %v28, %v42
    %vm63 = vcmp.eq.s32.totalorder %v28, %v45
    %vm64 = vcmp.eq.s32.totalorder %v28, %v48
    %vm65 = vcmp.eq.s32.totalorder %v28, %v51
    %vm66 = vcmp.eq.s32.totalorder %v28, %v54
    %vm67 = vcmp.eq.s32.totalorder %v28, %v57
    %vm68 = vcmp.eq.s32.totalorder %v28, %v60
    %v69 = vsel %vm61, 1, 0
    %v70 = vsel %vm62, 1, 0
    %v71 = vsel %vm63, 1, 0
    %v72 = vsel %vm64, 1, 0
    %v73 = vsel %vm65, 1, 0
    %v74 = vsel %vm66, 1, 0
    %v75 = vsel %vm67, 1, 0
    %v76 = vsel %vm68, 1, 0
    %v77 = vcvt.s32.f32 %v69
    %v78 = vcvt.s32.f32 %v70
    %v79 = vcvt.s32.f32 %v71
    %v80 = vcvt.s32.f32 %v72
    %v81 = vcvt.s32.f32 %v73
    %v82 = vcvt.s32.f32 %v74
    %v83 = vcvt.s32.f32 %v75
    %v84 = vcvt.s32.f32 %v76
    %v85 = vld [vmem:[%s1] sm:$0xff]
    %v86 = vld [vmem:[%s1 + $0x8] sm:$0xff]
    %v87 = vld [vmem:[%s1 + $0x10] sm:$0xff]
    %v88 = vld [vmem:[%s1 + $0x18] sm:$0xff]
    %v89 = vld [vmem:[%s1 + $0x20] sm:$0xff]
    %v90 = vld [vmem:[%s1 + $0x28] sm:$0xff]
    %v91 = vld [vmem:[%s1 + $0x30] sm:$0xff]
    %v92 = vld [vmem:[%s1 + $0x38] sm:$0xff]
    %v93 = vld [vmem:[%s1 + $0x40] sm:$0xff]
    %v94 = vld [vmem:[%s1 + $0x48] sm:$0xff]
    %v95 = vld [vmem:[%s1 + $0x50] sm:$0xff]
    %v96 = vld [vmem:[%s1 + $0x58] sm:$0xff]
    %v97 = vld [vmem:[%s1 + $0x60] sm:$0xff]
    %v98 = vld [vmem:[%s1 + $0x68] sm:$0xff]
    %v99 = vld [vmem:[%s1 + $0x70] sm:$0xff]
    %v100 = vld [vmem:[%s1 + $0x78] sm:$0xff]
    %101 = vmatpush.msra.mxu0 %v100
    %102 = vmatpush.msra.mxu0 %v99
    %103 = vmatpush.msra.mxu0 %v98
    %104 = vmatpush.msra.mxu0 %v97
    %105 = vmatpush.msra.mxu0 %v96
    %106 = vmatpush.msra.mxu0 %v95
    %107 = vmatpush.msra.mxu0 %v94
    %108 = vmatpush.msra.mxu0 %v93
    %109 = vmatpush.msra.mxu0 %v92
    %110 = vmatpush.msra.mxu0 %v91
    %111 = vmatpush.msra.mxu0 %v90
    %112 = vmatpush.msra.mxu0 %v89
    %113 = vmatpush.msra.mxu0 %v88
    %114 = vmatpush.msra.mxu0 %v87
    %115 = vmatpush.msra.mxu0 %v86
    %116 = vmatpush.msra.mxu0 %v85
    %117 = vmatmul.f32.gmra.mxu0 %v77
    %v118 = vpop.f32.mrf.mxu0
    %v119 = vadd.f32 0.0, %v118
    %120 = vmatmul.f32.gmra.mxu0 %v78
    %v121 = vpop.f32.mrf.mxu0
    %v122 = vadd.f32 0.0, %v121
    %123 = vmatmul.f32.gmra.mxu0 %v79
    %v124 = vpop.f32.mrf.mxu0
    %v125 = vadd.f32 0.0, %v124
    %126 = vmatmul.f32.gmra.mxu0 %v80
    %v127 = vpop.f32.mrf.mxu0
    %v128 = vadd.f32 0.0, %v127
    %129 = vmatmul.f32.gmra.mxu0 %v81
    %v130 = vpop.f32.mrf.mxu0
    %v131 = vadd.f32 0.0, %v130
    %132 = vmatmul.f32.gmra.mxu0 %v82
    %v133 = vpop.f32.mrf.mxu0
    %v134 = vadd.f32 0.0, %v133
    %135 = vmatmul.f32.gmra.mxu0 %v83
    %v136 = vpop.f32.mrf.mxu0
    %v137 = vadd.f32 0.0, %v136
    %138 = vmatmul.f32.gmra.mxu0 %v84
    %v139 = vpop.f32.mrf.mxu0
    %v140 = vadd.f32 0.0, %v139
    %141 = vdwg.mxu0
    %v142 = vld [vmem:[%s2] sm:$0xff]
    %v143 = vld [vmem:[%s2 + $0x8] sm:$0xff]
    %v144 = vld [vmem:[%s2 + $0x10] sm:$0xff]
    %v145 = vld [vmem:[%s2 + $0x18] sm:$0xff]
    %v146 = vld [vmem:[%s4] sm:$0x1]
    %v148 = vperm.slane %v146, 0
    %vm150 = vcmask 261120
    %v152 = vsel %vm150, %v119, 0
    %v155 = vsel %vm150, %v122, 0
    %v158 = vsel %vm150, %v125, 0
    %v161 = vsel %vm150, %v128, 0
    %v164 = vsel %vm150, %v131, 0
    %v167 = vsel %vm150, %v134, 0
    %v170 = vsel %vm150, %v137, 0
    %v173 = vsel %vm150, %v140, 0
    %175 = vmatpush.msra.mxu0 0.0
    %176 = vmatpush.msra.mxu0 0.0
    %177 = vmatpush.msra.mxu0 0.0
    %178 = vmatpush.msra.mxu0 0.0
    %179 = vmatpush.msra.mxu0 0.0
    %180 = vmatpush.msra.mxu0 0.0
    %181 = vmatpush.msra.mxu0 0.0
    %182 = vmatpush.msra.mxu0 0.0
    %183 = vmatpush.msra.mxu0 0.0
    %184 = vmatpush.msra.mxu0 0.0
    %185 = vmatpush.msra.mxu0 0.0
    %186 = vmatpush.msra.mxu0 0.0
    %187 = vmatpush.msra.mxu0 %v145
    %188 = vmatpush.msra.mxu0 %v144
    %189 = vmatpush.msra.mxu0 %v143
    %190 = vmatpush.msra.mxu0 %v142
    %191 = vmatmul.f32.gmra.mxu0 %v152
    %v192 = vpop.f32.mrf.mxu0
    %v193 = vadd.f32 %v148, %v192
    %194 = vmatmul.f32.gmra.mxu0 %v155
    %v195 = vpop.f32.mrf.mxu0
    %v196 = vadd.f32 %v148, %v195
    %197 = vmatmul.f32.gmra.mxu0 %v158
    %v198 = vpop.f32.mrf.mxu0
    %v199 = vadd.f32 %v148, %v198
    %200 = vmatmul.f32.gmra.mxu0 %v161
    %v201 = vpop.f32.mrf.mxu0
    %v202 = vadd.f32 %v148, %v201
    %203 = vmatmul.f32.gmra.mxu0 %v164
    %v204 = vpop.f32.mrf.mxu0
    %v205 = vadd.f32 %v148, %v204
    %206 = vmatmul.f32.gmra.mxu0 %v167
    %v207 = vpop.f32.mrf.mxu0
    %v208 = vadd.f32 %v148, %v207
    %209 = vmatmul.f32.gmra.mxu0 %v170
    %v210 = vpop.f32.mrf.mxu0
    %v211 = vadd.f32 %v148, %v210
    %212 = vmatmul.f32.gmra.mxu0 %v173
    %v213 = vpop.f32.mrf.mxu0
    %v214 = vadd.f32 %v148, %v213
    %215 = vdwg.mxu0
    %v216 = vld [vmem:[%s3] sm:$0xff]
    %v217 = vld [vmem:[%s3 + $0x8] sm:$0xff]
    %v218 = vld [vmem:[%s3 + $0x10] sm:$0xff]
    %v219 = vld [vmem:[%s3 + $0x18] sm:$0xff]
    %v221 = vsel %vm150, 0.0, 0
    %223 = vmatpush.msra.mxu0 0.0
    %224 = vmatpush.msra.mxu0 0.0
    %225 = vmatpush.msra.mxu0 0.0
    %226 = vmatpush.msra.mxu0 0.0
    %227 = vmatpush.msra.mxu0 0.0
    %228 = vmatpush.msra.mxu0 0.0
    %229 = vmatpush.msra.mxu0 0.0
    %230 = vmatpush.msra.mxu0 0.0
    %231 = vmatpush.msra.mxu0 0.0
    %232 = vmatpush.msra.mxu0 0.0
    %233 = vmatpush.msra.mxu0 0.0
    %234 = vmatpush.msra.mxu0 0.0
    %235 = vmatpush.msra.mxu0 %v219
    %236 = vmatpush.msra.mxu0 %v218
    %237 = vmatpush.msra.mxu0 %v217
    %238 = vmatpush.msra.mxu0 %v216
    %239 = vmatmul.f32.gmra.mxu0 %v221
    %v240 = vpop.f32.mrf.mxu0
    %v241 = vadd.f32 0.0, %v240
    %242 = vdwg.mxu0
    %v243 = vadd.f32 %v193, %v241
    %v244 = vtanh.pop %v243
    %v246 = vsel %vm150, %v244, 0
    %248 = vmatpush.msra.mxu0 0.0
    %249 = vmatpush.msra.mxu0 0.0
    %250 = vmatpush.msra.mxu0 0.0
    %251 = vmatpush.msra.mxu0 0.0
    %252 = vmatpush.msra.mxu0 0.0
    %253 = vmatpush.msra.mxu0 0.0
    %254 = vmatpush.msra.mxu0 0.0
    %255 = vmatpush.msra.mxu0 0.0
    %256 = vmatpush.msra.mxu0 0.0
    %257 = vmatpush.msra.mxu0 0.0
    %258 = vmatpush.msra.mxu0 0.0
    %259 = vmatpush.msra.mxu0 0.0
    %260 = vmatpush.msra.mxu0 %v219
    %261 = vmatpush.msra.mxu0 %v218
    %262 = vmatpush.msra.mxu0 %v217
    %263 = vmatpush.msra.mxu0 %v216
    %264 = vmatmul.f32.gmra.mxu0 %v246
    %v265 = vpop.f32.mrf.mxu0
    %v266 = vadd.f32 0.0, %v265
    %267 = vdwg.mxu0
    %v268 = vadd.f32 %v196, %v266
    %v269 = vtanh.pop %v268
    %v271 = vsel %vm150, %v269, 0
    %273 = vmatpush.msra.mxu0 0.0
    %274 = vmatpush.msra.mxu0 0.0
    %275 = vmatpush.msra.mxu0 0.0
    %276 = vmatpush.msra.mxu0 0.0
    %277 = vmatpush.msra.mxu0 0.0
    %278 = vmatpush.msra.mxu0 0.0
    %279 = vmatpush.msra.mxu0 0.0
    %280 = vmatpush.msra.mxu0 0.0
    %281 = vmatpush.msra.mxu0 0.0
    %282 = vmatpush.msra.mxu0 0.0
    %283 = vmatpush.msra.mxu0 0.0
    %284 = vmatpush.msra.mxu0 0.0
    %285 = vmatpush.msra.mxu0 %v219
    %286 = vmatpush.msra.mxu0 %v218
    %287 = vmatpush.msra.mxu0 %v217
    %288 = vmatpush.msra.mxu0 %v216
    %289 = vmatmul.f32.gmra.mxu0 %v271
    %v290 = vpop.f32.mrf.mxu0
    %v291 = vadd.f32 0.0, %v290
    %292 = vdwg.mxu0
    %v293 = vadd.f32 %v199, %v291
    %v294 = vtanh.pop %v293
    %v296 = vsel %vm150, %v294, 0
    %298 = vmatpush.msra.mxu0 0.0
    %299 = vmatpush.msra.mxu0 0.0
    %300 = vmatpush.msra.mxu0 0.0
    %301 = vmatpush.msra.mxu0 0.0
    %302 = vmatpush.msra.mxu0 0.0
    %303 = vmatpush.msra.mxu0 0.0
    %304 = vmatpush.msra.mxu0 0.0
    %305 = vmatpush.msra.mxu0 0.0
    %306 = vmatpush.msra.mxu0 0.0
    %307 = vmatpush.msra.mxu0 0.0
    %308 = vmatpush.msra.mxu0 0.0
    %309 = vmatpush.msra.mxu0 0.0
    %310 = vmatpush.msra.mxu0 %v219
    %311 = vmatpush.msra.mxu0 %v218
    %312 = vmatpush.msra.mxu0 %v217
    %313 = vmatpush.msra.mxu0 %v216
    %314 = vmatmul.f32.gmra.mxu0 %v296
    %v315 = vpop.f32.mrf.mxu0
    %v316 = vadd.f32 0.0, %v315
    %317 = vdwg.mxu0
    %v318 = vadd.f32 %v202, %v316
    %v319 = vtanh.pop %v318
    %v321 = vsel %vm150, %v319, 0
    %323 = vmatpush.msra.mxu0 0.0
    %324 = vmatpush.msra.mxu0 0.0
    %325 = vmatpush.msra.mxu0 0.0
    %326 = vmatpush.msra.mxu0 0.0
    %327 = vmatpush.msra.mxu0 0.0
    %328 = vmatpush.msra.mxu0 0.0
    %329 = vmatpush.msra.mxu0 0.0
    %330 = vmatpush.msra.mxu0 0.0
    %331 = vmatpush.msra.mxu0 0.0
    %332 = vmatpush.msra.mxu0 0.0
    %333 = vmatpush.msra.mxu0 0.0
    %334 = vmatpush.msra.mxu0 0.0
    %335 = vmatpush.msra.mxu0 %v219
    %336 = vmatpush.msra.mxu0 %v218
    %337 = vmatpush.msra.mxu0 %v217
    %338 = vmatpush.msra.mxu0 %v216
    %339 = vmatmul.f32.gmra.mxu0 %v321
    %v340 = vpop.f32.mrf.mxu0
    %v341 = vadd.f32 0.0, %v340
    %342 = vdwg.mxu0
    %v343 = vadd.f32 %v205, %v341
    %v344 = vtanh.pop %v343
    %v346 = vsel %vm150, %v344, 0
    %348 = vmatpush.msra.mxu0 0.0
    %349 = vmatpush.msra.mxu0 0.0
    %350 = vmatpush.msra.mxu0 0.0
    %351 = vmatpush.msra.mxu0 0.0
    %352 = vmatpush.msra.mxu0 0.0
    %353 = vmatpush.msra.mxu0 0.0
    %354 = vmatpush.msra.mxu0 0.0
    %355 = vmatpush.msra.mxu0 0.0
    %356 = vmatpush.msra.mxu0 0.0
    %357 = vmatpush.msra.mxu0 0.0
    %358 = vmatpush.msra.mxu0 0.0
    %359 = vmatpush.msra.mxu0 0.0
    %360 = vmatpush.msra.mxu0 %v219
    %361 = vmatpush.msra.mxu0 %v218
    %362 = vmatpush.msra.mxu0 %v217
    %363 = vmatpush.msra.mxu0 %v216
    %364 = vmatmul.f32.gmra.mxu0 %v346
    %v365 = vpop.f32.mrf.mxu0
    %v366 = vadd.f32 0.0, %v365
    %367 = vdwg.mxu0
    %v368 = vadd.f32 %v208, %v366
    %v369 = vtanh.pop %v368
    %v371 = vsel %vm150, %v369, 0
    %373 = vmatpush.msra.mxu0 0.0
    %374 = vmatpush.msra.mxu0 0.0
    %375 = vmatpush.msra.mxu0 0.0
    %376 = vmatpush.msra.mxu0 0.0
    %377 = vmatpush.msra.mxu0 0.0
    %378 = vmatpush.msra.mxu0 0.0
    %379 = vmatpush.msra.mxu0 0.0
    %380 = vmatpush.msra.mxu0 0.0
    %381 = vmatpush.msra.mxu0 0.0
    %382 = vmatpush.msra.mxu0 0.0
    %383 = vmatpush.msra.mxu0 0.0
    %384 = vmatpush.msra.mxu0 0.0
    %385 = vmatpush.msra.mxu0 %v219
    %386 = vmatpush.msra.mxu0 %v218
    %387 = vmatpush.msra.mxu0 %v217
    %388 = vmatpush.msra.mxu0 %v216
    %389 = vmatmul.f32.gmra.mxu0 %v371
    %v390 = vpop.f32.mrf.mxu0
    %v391 = vadd.f32 0.0, %v390
    %392 = vdwg.mxu0
    %v393 = vadd.f32 %v211, %v391
    %v394 = vtanh.pop %v393
    %v396 = vsel %vm150, %v394, 0
    %398 = vmatpush.msra.mxu0 0.0
    %399 = vmatpush.msra.mxu0 0.0
    %400 = vmatpush.msra.mxu0 0.0
    %401 = vmatpush.msra.mxu0 0.0
    %402 = vmatpush.msra.mxu0 0.0
    %403 = vmatpush.msra.mxu0 0.0
    %404 = vmatpush.msra.mxu0 0.0
    %405 = vmatpush.msra.mxu0 0.0
    %406 = vmatpush.msra.mxu0 0.0
    %407 = vmatpush.msra.mxu0 0.0
    %408 = vmatpush.msra.mxu0 0.0
    %409 = vmatpush.msra.mxu0 0.0
    %410 = vmatpush.msra.mxu0 %v219
    %411 = vmatpush.msra.mxu0 %v218
    %412 = vmatpush.msra.mxu0 %v217
    %413 = vmatpush.msra.mxu0 %v216
    %414 = vmatmul.f32.gmra.mxu0 %v396
    %v415 = vpop.f32.mrf.mxu0
    %v416 = vadd.f32 0.0, %v415
    %417 = vdwg.mxu0
    %v418 = vadd.f32 %v214, %v416
    %v419 = vtanh.pop %v418
    %v420 = vld [vmem:[%s5] sm:$0xff]
    %v421 = vld [vmem:[%s5 + $0x8] sm:$0xff]
    %v422 = vld [vmem:[%s5 + $0x10] sm:$0xff]
    %v423 = vld [vmem:[%s5 + $0x18] sm:$0xff]
    %v424 = vld [vmem:[%s6] sm:$0x1]
    %v426 = vperm.slane %v424, 0
    %v429 = vsel %vm150, %v419, 0
    %431 = vmatpush.msra.mxu0 0.0
    %432 = vmatpush.msra.mxu0 0.0
    %433 = vmatpush.msra.mxu0 0.0
    %434 = vmatpush.msra.mxu0 0.0
    %435 = vmatpush.msra.mxu0 0.0
    %436 = vmatpush.msra.mxu0 0.0
    %437 = vmatpush.msra.mxu0 0.0
    %438 = vmatpush.msra.mxu0 0.0
    %439 = vmatpush.msra.mxu0 0.0
    %440 = vmatpush.msra.mxu0 0.0
    %441 = vmatpush.msra.mxu0 0.0
    %442 = vmatpush.msra.mxu0 0.0
    %443 = vmatpush.msra.mxu0 %v423
    %444 = vmatpush.msra.mxu0 %v422
    %445 = vmatpush.msra.mxu0 %v421
    %446 = vmatpush.msra.mxu0 %v420
    %447 = vmatmul.f32.gmra.mxu0 %v429
    %v448 = vpop.f32.mrf.mxu0
    %v449 = vadd.f32 %v426, %v448
    %450 = vdwg.mxu0
    %vm451 = vcmp.lt.s32.totalorder %v28, 6
    %v452 = vsel %vm451, %v449, -1e+30
    %453 = vmax.xlane.f32.xlu0 %v452
    %v454 = vpop.xlane.xlu0 %453
    %v455 = vsub.f32 %v452, %v454
    %v456 = vmul.f32 %v455, 1.442695
    %v457 = vpow.pop %v456
    %458 = vadd.xlane.f32.xlu0 %v457
    %v459 = vpop.xlane.xlu0 %458
    %v460 = vlog2.pop %v459
    %v461 = vmul.f32 %v460, 0.6931472
    %v462 = vsub.f32 %v455, %v461
    %463 = vst [vmem:[#allocation2] sm:$0xff] %v462
    // Predicated region
    $region30: #{tpu_custom_call.1} parent=1 // pred_check
      _
    $region31: #{tpu_custom_call.1} parent=1 // pred_check_branch
      %465 = sbr.rel (0) target = $region33
    $region32: #{tpu_custom_call.1} parent=1 // pred_region
      %467 = vsyncadd [#allocation3], 0
      %s469 = sshll.u32 [#allocation2], 4
      %s470 = int_to_ptr.vmem [resolvable:$true] %s469
      %s471 = sshll.u32 %s7, 4
      %s472 = int_to_ptr.hbm [resolvable:$true] %s471
      %474 = dma.vmem_to_hbm [thread:$0]  %s470, 128, %s472, [#allocation3]
    $region33: #{tpu_custom_call.1} parent=1 // pred_fallthru
      _
    // Predicated region
    $region34: #{tpu_custom_call.1} parent=1 // pred_check
      _
    $region35: #{tpu_custom_call.1} parent=1 // pred_check_branch
      %476 = sbr.rel (0) target = $region37
    $region36: #{tpu_custom_call.1} parent=1 // pred_region
      %478 = dma.done [#allocation3], 128
    $region37: #{tpu_custom_call.1} parent=1 // pred_fallthru
      _
    %479 = vsyncpa [#allocation3], 1

</llo_original>
